<compile_context>
chip_gen: v6e
topology: v6e:2x2x1
jax: 0.10.0
libtpu: 0.0.40
codegen_flags: <defaults>
</compile_context>

<pallas_src>
import functools

import numpy as np

import jax
import jax.numpy as jnp
from jax import lax
from jax.experimental import pallas as pl
from jax.experimental.pallas import tpu as pltpu


# ---------------------------------------------------------------------------
# Helpers
# ---------------------------------------------------------------------------

def _round_up(x, m):
    return ((x + m - 1) // m) * m


def _sublane_mult(itemsize):
    # A vreg is (8, 128) x 32-bit; sub-32-bit dtypes pack along sublanes.
    return 8 * max(1, 4 // int(itemsize))


def _vmem_padded_bytes(shape, dtype):
    """Bytes an array occupies in VMEM after (sublane, lane) tile padding."""
    itemsize = np.dtype(dtype).itemsize
    shape = tuple(int(s) for s in shape)
    if len(shape) == 0:
        return 4
    if len(shape) == 1:
        shape = (1,) + shape
    lead = int(np.prod(shape[:-2])) if len(shape) > 2 else 1
    sub = _round_up(shape[-2], _sublane_mult(itemsize))
    lane = _round_up(shape[-1], 128)
    return lead * sub * lane * itemsize


def _vmem_capacity_bytes():
    try:
        return int(pltpu.get_tpu_info().vmem_capacity_bytes)
    except Exception:
        return 64 << 20   # v7x per-TensorCore VMEM — the most restrictive target


# ---------------------------------------------------------------------------
# Kernels
# ---------------------------------------------------------------------------

def _linear_single_kernel(x_ref, wt_ref, b_ref, o_ref):
    """Whole problem resident in VMEM: x (B, F) · W^T (N, F) + b, one store."""
    o_ref[...] = (
        lax.dot_general(
            x_ref[...], wt_ref[...],
            dimension_numbers=(((1,), (1,)), ((), ())),   # contract lane-dense F
            preferred_element_type=jnp.float32,
        )
        + b_ref[...]
    ).astype(o_ref.dtype)


def _linear_kdense_kernel(x_ref, wt_ref, b_ref, o_ref, acc_ref, *,
                          f_total, tk, needs_mask):
    """K-reduction step: x slab (B, tk) × lane-dense weight slab (N, tk)."""
    k = pl.program_id(0)

    @pl.when(k == 0)
    def _():
        acc_ref[...] = jnp.zeros_like(acc_ref)

    x = x_ref[...]
    wt = wt_ref[...]
    if needs_mask:
        # Zero the out-of-range K lanes of the partial last block (both
        # operands, so OOB garbage — even NaN bits — cannot leak into the acc).
        col_x = k * tk + lax.broadcasted_iota(jnp.int32, x.shape, 1)
        x = jnp.where(col_x < f_total, x, 0)
        col_w = k * tk + lax.broadcasted_iota(jnp.int32, wt.shape, 1)
        wt = jnp.where(col_w < f_total, wt, 0)

    # Contract the lane-dense K axis of both slabs: (B, tk) x (N, tk) -> (B, N).
    # (Any hidden per-step transpose of the (N, tk) slab runs on the XLU, which
    #  has slack here — this kernel is HBM-bandwidth bound.)
    acc_ref[...] += lax.dot_general(
        x, wt,
        dimension_numbers=(((1,), (1,)), ((), ())),
        preferred_element_type=jnp.float32,
    )

    @pl.when(k == pl.num_programs(0) - 1)
    def _():
        o_ref[...] = (acc_ref[...] + b_ref[...]).astype(o_ref.dtype)


# ---------------------------------------------------------------------------
# Parameter prep (construction-time, NOT in the hot path)
# ---------------------------------------------------------------------------

def prepare_privacy_head_params(weight, bias):
    """One-time prep of the probe parameters.

    weight: (F, N)  ->  returns lane-dense W^T of shape (N, F)
    bias:   (N,)    ->  returns (1, N)
    """
    weight = jnp.asarray(weight)
    bias = jnp.asarray(bias)
    return jnp.transpose(weight), bias.reshape(1, -1)


# ---------------------------------------------------------------------------
# Wrapper (= PrivacyHead.forward / forward_attached)
# ---------------------------------------------------------------------------

def privacy_head_forward(
    bottleneck,
    weight_t,
    bias2d,
    *,
    tk=None,                    # K-tile (columns); default sized by bytes/step
    target_step_bytes=2 << 20,  # ~2 MB of HBM traffic per grid step
    force_tiled=False,          # for testing the K-reduction path
):
    """Pallas implementation of PrivacyHead.forward().

    bottleneck: (B, C, H, W) (or any (B, ...)) activation from the hooked layer
    weight_t:   (N, F) lane-dense transposed probe weight (from prepare_*)
    bias2d:     (1, N)
    returns:    (B, N) logits
    """
    B = bottleneck.shape[0]
    F = int(np.prod(bottleneck.shape[1:]))
    N, Fw = weight_t.shape
    assert Fw == F, "classifier in_features must match flattened bottleneck"
    assert bias2d.shape == (1, N)

    # glue: x.view(-1, prod(shape[1:])); clone/detach are no-ops in JAX.
    x = bottleneck.reshape(B, F)
    out_dtype = x.dtype
    vmem_cap = _vmem_capacity_bytes()

    # VMEM footprint of the fully-resident problem, (sublane, lane) padded.
    padded_resident = (
        _vmem_padded_bytes((B, F), x.dtype)
        + _vmem_padded_bytes((N, F), weight_t.dtype)
        + _vmem_padded_bytes((1, N), bias2d.dtype)
        + _vmem_padded_bytes((B, N), out_dtype)
    )

    # ---- small/medium path: single grid-free invocation, fully VMEM resident
    if not force_tiled and padded_resident <= int(0.40 * vmem_cap):
        vmem_limit = int(min(vmem_cap,
                             max(2 * padded_resident + (2 << 20), 32 << 20)))
        return pl.pallas_call(
            _linear_single_kernel,
            out_shape=jax.ShapeDtypeStruct((B, N), out_dtype),
            in_specs=[pl.BlockSpec(memory_space=pltpu.MemorySpace.VMEM)] * 3,
            out_specs=pl.BlockSpec(memory_space=pltpu.MemorySpace.VMEM),
            compiler_params=pltpu.CompilerParams(vmem_limit_bytes=vmem_limit),
        )(x, weight_t, bias2d)

    # ---- large-F path: K-reduction grid, lane-dense slabs, big K tiles ----
    itemsize = max(np.dtype(x.dtype).itemsize, np.dtype(weight_t.dtype).itemsize)
    sub = _sublane_mult(itemsize)
    per_col_vmem = (_round_up(B, sub) + _round_up(N, sub)) * itemsize

    if tk is None:
        # Size the tile by HBM bytes streamed per grid step, so the ~0.35 us
        # fixed per-step overhead is amortized (tiny B/N => tens of K columns).
        per_col_hbm = (B + N) * itemsize
        tk = max(512, target_step_bytes // per_col_hbm)
        # Keep the double-buffered input footprint well inside scoped VMEM.
        vmem_budget = min(12 << 20, int(0.35 * vmem_cap))
        tk = min(tk, vmem_budget // (2 * per_col_vmem))
    tk = int(min(tk, _round_up(F, 128)))       # no point exceeding F
    tk = max(128, (tk // 128) * 128)           # lane-aligned

    n_steps = pl.cdiv(F, tk)
    needs_mask = (F % tk) != 0

    vmem_needed = (
        2 * per_col_vmem * tk                                  # double-buffered slabs
        + _vmem_padded_bytes((B, N), out_dtype)
        + _vmem_padded_bytes((B, N), jnp.float32)              # accumulator
        + _vmem_padded_bytes((1, N), bias2d.dtype)
    )
    vmem_limit = int(min(vmem_cap, max(vmem_needed + (8 << 20), 32 << 20)))

    kernel = functools.partial(
        _linear_kdense_kernel, f_total=F, tk=tk, needs_mask=needs_mask
    )

    # TODO(synk): on v7x, add a leading size-2 "parallel" K-split producing
    # (2, B, N) partials summed in JAX so both TensorCores share the W stream.
    return pl.pallas_call(
        kernel,
        out_shape=jax.ShapeDtypeStruct((B, N), out_dtype),
        grid_spec=pltpu.PrefetchScalarGridSpec(
            num_scalar_prefetch=0,
            grid=(n_steps,),
            in_specs=[
                pl.BlockSpec((B, tk), lambda k: (0, k)),   # x slab (lane-dense K)
                pl.BlockSpec((N, tk), lambda k: (0, k)),   # W^T slab (lane-dense K)
                pl.BlockSpec((1, N), lambda k: (0, 0)),    # bias (resident)
            ],
            out_specs=pl.BlockSpec((B, N), lambda k: (0, 0)),   # resident output
            scratch_shapes=[pltpu.VMEM((B, N), jnp.float32)],
        ),
        compiler_params=pltpu.CompilerParams(
            dimension_semantics=("arbitrary",),            # K is a reduction axis
            vmem_limit_bytes=vmem_limit,
        ),
    )(x, weight_t, bias2d)


# ---------------------------------------------------------------------------
# Self-test
# ---------------------------------------------------------------------------

if __name__ == "__main__":
    # Small shapes consistent with a conv bottleneck feeding the privacy head.
    B, C, H, W = 2, 4, 16, 16          # bottleneck activation (NCHW)
    F = C * H * W                      # 1024 flattened features
    NUM_CLASSES = 8                    # privacy attribute classes

    key = jax.random.PRNGKey(0)
    k_x, k_w, k_b = jax.random.split(key, 3)

    bottleneck = jax.random.normal(k_x, (B, C, H, W), dtype=jnp.float32)
    weight = jax.random.normal(k_w, (F, NUM_CLASSES), dtype=jnp.float32) * 0.02
    bias = jax.random.normal(k_b, (NUM_CLASSES,), dtype=jnp.float32) * 0.02

    ref = bottleneck.reshape(B, F) @ weight + bias

    # One-time parameter prep (construction-time, outside the hot path).
    weight_t, bias2d = prepare_privacy_head_params(weight, bias)

    # Default (single-step, fully VMEM-resident) path.
    out = jax.block_until_ready(privacy_head_forward(bottleneck, weight_t, bias2d))
    np.testing.assert_allclose(np.asarray(out), np.asarray(ref), rtol=1e-5, atol=1e-5)

    # Force the K-reduction path with a partial last block (F=1024, tk=768 ->
    # 2 steps, in-kernel masking) to verify the tiled kernel as well.
    out_tiled = jax.block_until_ready(
        privacy_head_forward(bottleneck, weight_t, bias2d, tk=768, force_tiled=True)
    )
    np.testing.assert_allclose(
        np.asarray(out_tiled), np.asarray(ref), rtol=1e-5, atol=1e-5
    )

    print("KERNEL_OK")
</pallas_src>

<mosaic_0001>
module attributes {stable_mosaic.version = 11 : i64} {
  func.func @_linear_single_kernel(%arg0: memref<2x1024xf32, #tpu.memory_space<vmem>>, %arg1: memref<8x1024xf32, #tpu.memory_space<vmem>>, %arg2: memref<1x8xf32, #tpu.memory_space<vmem>>, %arg3: memref<2x8xf32, #tpu.memory_space<vmem>>) attributes {dimension_semantics = [], scalar_prefetch = 0 : i64, scratch_operands = 0 : i64, tpu.core_type = #tpu.core_type<tc>} {
    %c0 = arith.constant 0 : index
    %c0_0 = arith.constant 0 : index
    %0 = vector.load %arg0[%c0, %c0_0] : memref<2x1024xf32, #tpu.memory_space<vmem>>, vector<2x1024xf32>
    %c0_1 = arith.constant 0 : index
    %c0_2 = arith.constant 0 : index
    %1 = vector.load %arg1[%c0_1, %c0_2] : memref<8x1024xf32, #tpu.memory_space<vmem>>, vector<8x1024xf32>
    %cst = arith.constant dense<0.000000e+00> : vector<2x8xf32>
    %2 = tpu.matmul %0, %1, %cst {dimension_numbers = #tpu.dot_dimension_numbers<[1], [1], [0], [0], [0, 0, 1, 0], [], []>} : vector<2x1024xf32>, vector<8x1024xf32>, vector<2x8xf32> -> vector<2x8xf32>
    %c0_3 = arith.constant 0 : index
    %c0_4 = arith.constant 0 : index
    %3 = vector.load %arg2[%c0_3, %c0_4] : memref<1x8xf32, #tpu.memory_space<vmem>>, vector<1x8xf32>
    %4 = vector.broadcast %3 : vector<1x8xf32> to vector<2x8xf32>
    %5 = arith.addf %2, %4 : vector<2x8xf32>
    %c0_5 = arith.constant 0 : index
    %c0_6 = arith.constant 0 : index
    %6 = vector.load %arg3[%c0_5, %c0_6] : memref<2x8xf32, #tpu.memory_space<vmem>>, vector<2x8xf32>
    tpu.vector_store %arg3[%c0_5, %c0_6], %5 {strides = array<i32>} : memref<2x8xf32, #tpu.memory_space<vmem>>, vector<2x8xf32>,
    return
  }
}

</mosaic_0001>

<llo_original>
// kernel: tpu_custom_call.1
$region0: #{tpu_custom_call.1}
  #allocation0 [shape = 'u32[]', space=smem, size = 0x4, offset = 0x4, fixed_abs, tag = 'smem constant byte address 0x4 - core index']
  #allocation1 [shape = 'u32[144,128]{1,0:T(1,128)}', space=vmem, size = 0x12000, scoped, tag = 'internal scratch']
  %s0 = inlined_call_operand.hbm [shape: f32[2,1024], index: 0, kind: input, shape index: {}]
  %s1 = inlined_call_operand.hbm [shape: f32[8,1024], index: 1, kind: input, shape index: {}]
  %s2 = inlined_call_operand.vmem [shape: f32[1,8], index: 2, kind: input, shape index: {}]
  %s3 = inlined_call_operand.hbm [shape: f32[2,8], index: 3, kind: output, shape index: {}]
  %s4 = sld [smem:[#allocation0]]
  $region30: #{tpu_custom_call.1} parent=0
    _
  %s6 = ssub.s32 1, %s4
  %s7 = scalar_select 0, %s6, %s4
  $region1: #{tpu_custom_call.1} parent=0
    #allocation2 [shape = 'u8[8192]{0}', space=vmem, size = 0x2000, scoped, tag = 'input window, operand 0, single buffered']
    #allocation3 [shape = 's32[1]{0}', space=sflag, size = 0x4, scoped, tag = 'scoped memory for tpu_custom_call.1']
    #allocation4 [shape = 's32[1]{0}', space=sflag, size = 0x4, scoped, tag = 'scoped memory for tpu_custom_call.1']
    #allocation5 [shape = 'u8[32768]{0}', space=vmem, size = 0x8000, scoped, tag = 'input window, operand 1, single buffered']
    #allocation6 [shape = 's32[1]{0}', space=sflag, size = 0x4, scoped, tag = 'scoped memory for tpu_custom_call.1']
    #allocation7 [shape = 'u8[1024]{0}', space=vmem, size = 0x400, scoped, tag = 'output window, operand 0, single buffered']
    %8 = vsyncpa [#allocation3], 0
    %9 = vsyncpa [#allocation6], 0
    %10 = vsyncpa [#allocation4], 0
    // Predicated region
    $region2: #{tpu_custom_call.1} parent=1 // pred_check
      _
    $region3: #{tpu_custom_call.1} parent=1 // pred_check_branch
      %12 = sbr.rel (0) target = $region5
    $region4: #{tpu_custom_call.1} parent=1 // pred_region
      %s14 = ssub.s32 256, 256
      %15 = vsyncadd [#allocation3], %s14
      %s17 = sshll.u32 [#allocation2], 4
      %s18 = int_to_ptr.vmem [resolvable:$true] %s17
      %20 = dma.hbm_to_vmem [thread:$0]  %s0, 256, %s18, [#allocation3]
    $region5: #{tpu_custom_call.1} parent=1 // pred_fallthru
      _
    // Predicated region
    $region6: #{tpu_custom_call.1} parent=1 // pred_check
      _
    $region7: #{tpu_custom_call.1} parent=1 // pred_check_branch
      %22 = sbr.rel (0) target = $region9
    $region8: #{tpu_custom_call.1} parent=1 // pred_region
      %s24 = ssub.s32 1024, 1024
      %25 = vsyncadd [#allocation6], %s24
      %s27 = sshll.u32 [#allocation5], 4
      %s28 = int_to_ptr.vmem [resolvable:$true] %s27
      %30 = dma.hbm_to_vmem [thread:$0]  %s1, 1024, %s28, [#allocation6]
    $region9: #{tpu_custom_call.1} parent=1 // pred_fallthru
      _
    // Predicated region
    $region10: #{tpu_custom_call.1} parent=1 // pred_check
      _
    $region11: #{tpu_custom_call.1} parent=1 // pred_check_branch
      %32 = sbr.rel (0) target = $region13
    $region12: #{tpu_custom_call.1} parent=1 // pred_region
      _
    $region13: #{tpu_custom_call.1} parent=1 // pred_fallthru
      _
    // Predicated region
    $region14: #{tpu_custom_call.1} parent=1 // pred_check
      _
    $region15: #{tpu_custom_call.1} parent=1 // pred_check_branch
      %34 = sbr.rel (0) target = $region17
    $region16: #{tpu_custom_call.1} parent=1 // pred_region
      %35 = dma.done [#allocation3], 256
    $region17: #{tpu_custom_call.1} parent=1 // pred_fallthru
      _
    // Predicated region
    $region18: #{tpu_custom_call.1} parent=1 // pred_check
      _
    $region19: #{tpu_custom_call.1} parent=1 // pred_check_branch
      %37 = sbr.rel (0) target = $region21
    $region20: #{tpu_custom_call.1} parent=1 // pred_region
      %38 = dma.done [#allocation6], 1024
    $region21: #{tpu_custom_call.1} parent=1 // pred_fallthru
      _
    %v39 = vld [vmem:[#allocation2] sm:$0xff]
    %v40 = vld [vmem:[#allocation2 + $0x8] sm:$0xff]
    %v41 = vld [vmem:[#allocation5] sm:$0xff]
    %v42 = vld [vmem:[#allocation5 + $0x8] sm:$0xff]
    %v43 = vld [vmem:[#allocation5 + $0x10] sm:$0xff]
    %v44 = vld [vmem:[#allocation5 + $0x18] sm:$0xff]
    %v45 = vld [vmem:[#allocation5 + $0x20] sm:$0xff]
    %v46 = vld [vmem:[#allocation5 + $0x28] sm:$0xff]
    %v47 = vld [vmem:[#allocation5 + $0x30] sm:$0xff]
    %v48 = vld [vmem:[#allocation5 + $0x38] sm:$0xff]
    %v49 = vld [vmem:[%s2] sm:$0x1]
    %v51 = vlaneseq
    %v52 = vshrl.u32 %v51, 7
    %v53 = vsub.s32 0, %v52
    %v54 = vrot.slane %v49, %v53
    %v58 = vcombine.high %v39, %v39
    %v60 = vunpack.c.l.s4 1983009808
    %v61 = vunpack.c.0.s8 %v60
    %v62 = vlaneseq
    %v63 = vshrl.u32 %v62, 7
    %v64 = vsub.s32 %v61, %v63
    %v65 = vrot.slane %v39, %v64
    %v67 = vunpack.c.l.s4 1983009808
    %v68 = vunpack.c.0.s8 %v67
    %v69 = vlaneseq
    %v70 = vshrl.u32 %v69, 7
    %v71 = vsub.s32 %v68, %v70
    %v72 = vrot.slane %v58, %v71
    %v73 = vcombine.high %v65, %v65
    %v74 = vcombine.high %v72, %v72
    %v75 = vcombine.high %v40, %v40
    %v77 = vunpack.c.l.s4 1983009808
    %v78 = vunpack.c.0.s8 %v77
    %v79 = vlaneseq
    %v80 = vshrl.u32 %v79, 7
    %v81 = vsub.s32 %v78, %v80
    %v82 = vrot.slane %v40, %v81
    %v84 = vunpack.c.l.s4 1983009808
    %v85 = vunpack.c.0.s8 %v84
    %v86 = vlaneseq
    %v87 = vshrl.u32 %v86, 7
    %v88 = vsub.s32 %v85, %v87
    %v89 = vrot.slane %v75, %v88
    %v90 = vcombine.high %v82, %v82
    %v91 = vcombine.high %v89, %v89
    %100 = vmatprep.subr.mxu0 0.0
    %101 = vmatpush1.xpose.msra.mxu0 0.0
    %102 = vmatprep.subr.mxu0 0.0
    %103 = vmatpush1.xpose.msra.mxu0 0.0
    %104 = vmatprep.subr.mxu0 0.0
    %105 = vmatpush1.xpose.msra.mxu0 0.0
    %106 = vmatprep.subr.mxu0 0.0
    %107 = vmatpush1.xpose.msra.mxu0 0.0
    %108 = vmatprep.subr.mxu0 0.0
    %109 = vmatpush1.xpose.msra.mxu0 0.0
    %110 = vmatprep.subr.mxu0 0.0
    %111 = vmatpush1.xpose.msra.mxu0 0.0
    %112 = vmatprep.subr.mxu0 0.0
    %113 = vmatpush1.xpose.msra.mxu0 0.0
    %114 = vmatprep.subr.mxu0 0.0
    %115 = vmatpush1.xpose.msra.mxu0 0.0
    %116 = vmatprep.subr.mxu0 0.0
    %117 = vmatpush1.xpose.msra.mxu0 0.0
    %118 = vmatprep.subr.mxu0 0.0
    %119 = vmatpush1.xpose.msra.mxu0 0.0
    %120 = vmatprep.subr.mxu0 0.0
    %121 = vmatpush1.xpose.msra.mxu0 0.0
    %122 = vmatprep.subr.mxu0 0.0
    %123 = vmatpush1.xpose.msra.mxu0 0.0
    %124 = vmatprep.subr.mxu0 0.0
    %125 = vmatpush1.xpose.msra.mxu0 0.0
    %126 = vmatprep.subr.mxu0 0.0
    %127 = vmatpush1.xpose.msra.mxu0 0.0
    %128 = vmatprep.subr.mxu0 0.0
    %129 = vmatpush1.xpose.msra.mxu0 0.0
    %130 = vmatprep.subr.mxu0 %v42
    %131 = vmatpush1.xpose.msra.mxu0 %v41
    %132 = vmatprep.subr.mxu0 0.0
    %133 = vmatpush2.xpose.msra.mxu0 0.0
    %134 = vmatprep.subr.mxu0 0.0
    %135 = vmatpush2.xpose.msra.mxu0 0.0
    %136 = vmatprep.subr.mxu0 0.0
    %137 = vmatpush2.xpose.msra.mxu0 0.0
    %138 = vmatprep.subr.mxu0 0.0
    %139 = vmatpush2.xpose.msra.mxu0 0.0
    %140 = vmatprep.subr.mxu0 0.0
    %141 = vmatpush2.xpose.msra.mxu0 0.0
    %142 = vmatprep.subr.mxu0 0.0
    %143 = vmatpush2.xpose.msra.mxu0 0.0
    %144 = vmatprep.subr.mxu0 0.0
    %145 = vmatpush2.xpose.msra.mxu0 0.0
    %146 = vmatprep.subr.mxu0 0.0
    %147 = vmatpush2.xpose.msra.mxu0 0.0
    %148 = vmatprep.subr.mxu0 0.0
    %149 = vmatpush2.xpose.msra.mxu0 0.0
    %150 = vmatprep.subr.mxu0 0.0
    %151 = vmatpush2.xpose.msra.mxu0 0.0
    %152 = vmatprep.subr.mxu0 0.0
    %153 = vmatpush2.xpose.msra.mxu0 0.0
    %154 = vmatprep.subr.mxu0 0.0
    %155 = vmatpush2.xpose.msra.mxu0 0.0
    %156 = vmatprep.subr.mxu0 0.0
    %157 = vmatpush2.xpose.msra.mxu0 0.0
    %158 = vmatprep.subr.mxu0 0.0
    %159 = vmatpush2.xpose.msra.mxu0 0.0
    %160 = vmatprep.subr.mxu0 0.0
    %161 = vmatpush2.xpose.msra.mxu0 0.0
    %162 = vmatprep.subr.mxu0 0.0
    %163 = vmatpush2.xpose.msra.mxu0 0.0
    %164 = vmatprep.mubr.f32.mxu0 %v73
    %165 = vmatmul.mubr.f32.gmra.mxu0 %v65
    %v166 = vpop.f32.mrf.mxu0
    %v167 = vadd.f32 %v54, %v166
    %v168 = vpop.f32.mrf.mxu0
    %169 = vdwg.mxu0
    %170 = vmatprep.subr.mxu0 0.0
    %171 = vmatpush1.xpose.msra.mxu0 0.0
    %172 = vmatprep.subr.mxu0 0.0
    %173 = vmatpush1.xpose.msra.mxu0 0.0
    %174 = vmatprep.subr.mxu0 0.0
    %175 = vmatpush1.xpose.msra.mxu0 0.0
    %176 = vmatprep.subr.mxu0 0.0
    %177 = vmatpush1.xpose.msra.mxu0 0.0
    %178 = vmatprep.subr.mxu0 0.0
    %179 = vmatpush1.xpose.msra.mxu0 0.0
    %180 = vmatprep.subr.mxu0 0.0
    %181 = vmatpush1.xpose.msra.mxu0 0.0
    %182 = vmatprep.subr.mxu0 0.0
    %183 = vmatpush1.xpose.msra.mxu0 0.0
    %184 = vmatprep.subr.mxu0 0.0
    %185 = vmatpush1.xpose.msra.mxu0 0.0
    %186 = vmatprep.subr.mxu0 0.0
    %187 = vmatpush1.xpose.msra.mxu0 0.0
    %188 = vmatprep.subr.mxu0 0.0
    %189 = vmatpush1.xpose.msra.mxu0 0.0
    %190 = vmatprep.subr.mxu0 0.0
    %191 = vmatpush1.xpose.msra.mxu0 0.0
    %192 = vmatprep.subr.mxu0 0.0
    %193 = vmatpush1.xpose.msra.mxu0 0.0
    %194 = vmatprep.subr.mxu0 0.0
    %195 = vmatpush1.xpose.msra.mxu0 0.0
    %196 = vmatprep.subr.mxu0 0.0
    %197 = vmatpush1.xpose.msra.mxu0 0.0
    %198 = vmatprep.subr.mxu0 0.0
    %199 = vmatpush1.xpose.msra.mxu0 0.0
    %200 = vmatprep.subr.mxu0 %v44
    %201 = vmatpush1.xpose.msra.mxu0 %v43
    %202 = vmatprep.subr.mxu0 0.0
    %203 = vmatpush2.xpose.msra.mxu0 0.0
    %204 = vmatprep.subr.mxu0 0.0
    %205 = vmatpush2.xpose.msra.mxu0 0.0
    %206 = vmatprep.subr.mxu0 0.0
    %207 = vmatpush2.xpose.msra.mxu0 0.0
    %208 = vmatprep.subr.mxu0 0.0
    %209 = vmatpush2.xpose.msra.mxu0 0.0
    %210 = vmatprep.subr.mxu0 0.0
    %211 = vmatpush2.xpose.msra.mxu0 0.0
    %212 = vmatprep.subr.mxu0 0.0
    %213 = vmatpush2.xpose.msra.mxu0 0.0
    %214 = vmatprep.subr.mxu0 0.0
    %215 = vmatpush2.xpose.msra.mxu0 0.0
    %216 = vmatprep.subr.mxu0 0.0
    %217 = vmatpush2.xpose.msra.mxu0 0.0
    %218 = vmatprep.subr.mxu0 0.0
    %219 = vmatpush2.xpose.msra.mxu0 0.0
    %220 = vmatprep.subr.mxu0 0.0
    %221 = vmatpush2.xpose.msra.mxu0 0.0
    %222 = vmatprep.subr.mxu0 0.0
    %223 = vmatpush2.xpose.msra.mxu0 0.0
    %224 = vmatprep.subr.mxu0 0.0
    %225 = vmatpush2.xpose.msra.mxu0 0.0
    %226 = vmatprep.subr.mxu0 0.0
    %227 = vmatpush2.xpose.msra.mxu0 0.0
    %228 = vmatprep.subr.mxu0 0.0
    %229 = vmatpush2.xpose.msra.mxu0 0.0
    %230 = vmatprep.subr.mxu0 0.0
    %231 = vmatpush2.xpose.msra.mxu0 0.0
    %232 = vmatprep.subr.mxu0 0.0
    %233 = vmatpush2.xpose.msra.mxu0 0.0
    %234 = vmatprep.mubr.f32.mxu0 %v74
    %235 = vmatmul.mubr.f32.gmra.mxu0 %v72
    %v236 = vpop.f32.mrf.mxu0
    %v237 = vadd.f32 %v167, %v236
    %v238 = vpop.f32.mrf.mxu0
    %239 = vdwg.mxu0
    %240 = vmatprep.subr.mxu0 0.0
    %241 = vmatpush1.xpose.msra.mxu0 0.0
    %242 = vmatprep.subr.mxu0 0.0
    %243 = vmatpush1.xpose.msra.mxu0 0.0
    %244 = vmatprep.subr.mxu0 0.0
    %245 = vmatpush1.xpose.msra.mxu0 0.0
    %246 = vmatprep.subr.mxu0 0.0
    %247 = vmatpush1.xpose.msra.mxu0 0.0
    %248 = vmatprep.subr.mxu0 0.0
    %249 = vmatpush1.xpose.msra.mxu0 0.0
    %250 = vmatprep.subr.mxu0 0.0
    %251 = vmatpush1.xpose.msra.mxu0 0.0
    %252 = vmatprep.subr.mxu0 0.0
    %253 = vmatpush1.xpose.msra.mxu0 0.0
    %254 = vmatprep.subr.mxu0 0.0
    %255 = vmatpush1.xpose.msra.mxu0 0.0
    %256 = vmatprep.subr.mxu0 0.0
    %257 = vmatpush1.xpose.msra.mxu0 0.0
    %258 = vmatprep.subr.mxu0 0.0
    %259 = vmatpush1.xpose.msra.mxu0 0.0
    %260 = vmatprep.subr.mxu0 0.0
    %261 = vmatpush1.xpose.msra.mxu0 0.0
    %262 = vmatprep.subr.mxu0 0.0
    %263 = vmatpush1.xpose.msra.mxu0 0.0
    %264 = vmatprep.subr.mxu0 0.0
    %265 = vmatpush1.xpose.msra.mxu0 0.0
    %266 = vmatprep.subr.mxu0 0.0
    %267 = vmatpush1.xpose.msra.mxu0 0.0
    %268 = vmatprep.subr.mxu0 0.0
    %269 = vmatpush1.xpose.msra.mxu0 0.0
    %270 = vmatprep.subr.mxu0 %v46
    %271 = vmatpush1.xpose.msra.mxu0 %v45
    %272 = vmatprep.subr.mxu0 0.0
    %273 = vmatpush2.xpose.msra.mxu0 0.0
    %274 = vmatprep.subr.mxu0 0.0
    %275 = vmatpush2.xpose.msra.mxu0 0.0
    %276 = vmatprep.subr.mxu0 0.0
    %277 = vmatpush2.xpose.msra.mxu0 0.0
    %278 = vmatprep.subr.mxu0 0.0
    %279 = vmatpush2.xpose.msra.mxu0 0.0
    %280 = vmatprep.subr.mxu0 0.0
    %281 = vmatpush2.xpose.msra.mxu0 0.0
    %282 = vmatprep.subr.mxu0 0.0
    %283 = vmatpush2.xpose.msra.mxu0 0.0
    %284 = vmatprep.subr.mxu0 0.0
    %285 = vmatpush2.xpose.msra.mxu0 0.0
    %286 = vmatprep.subr.mxu0 0.0
    %287 = vmatpush2.xpose.msra.mxu0 0.0
    %288 = vmatprep.subr.mxu0 0.0
    %289 = vmatpush2.xpose.msra.mxu0 0.0
    %290 = vmatprep.subr.mxu0 0.0
    %291 = vmatpush2.xpose.msra.mxu0 0.0
    %292 = vmatprep.subr.mxu0 0.0
    %293 = vmatpush2.xpose.msra.mxu0 0.0
    %294 = vmatprep.subr.mxu0 0.0
    %295 = vmatpush2.xpose.msra.mxu0 0.0
    %296 = vmatprep.subr.mxu0 0.0
    %297 = vmatpush2.xpose.msra.mxu0 0.0
    %298 = vmatprep.subr.mxu0 0.0
    %299 = vmatpush2.xpose.msra.mxu0 0.0
    %300 = vmatprep.subr.mxu0 0.0
    %301 = vmatpush2.xpose.msra.mxu0 0.0
    %302 = vmatprep.subr.mxu0 0.0
    %303 = vmatpush2.xpose.msra.mxu0 0.0
    %304 = vmatprep.mubr.f32.mxu0 %v90
    %305 = vmatmul.mubr.f32.gmra.mxu0 %v82
    %v306 = vpop.f32.mrf.mxu0
    %v307 = vadd.f32 %v237, %v306
    %v308 = vpop.f32.mrf.mxu0
    %309 = vdwg.mxu0
    %310 = vmatprep.subr.mxu0 0.0
    %311 = vmatpush1.xpose.msra.mxu0 0.0
    %312 = vmatprep.subr.mxu0 0.0
    %313 = vmatpush1.xpose.msra.mxu0 0.0
    %314 = vmatprep.subr.mxu0 0.0
    %315 = vmatpush1.xpose.msra.mxu0 0.0
    %316 = vmatprep.subr.mxu0 0.0
    %317 = vmatpush1.xpose.msra.mxu0 0.0
    %318 = vmatprep.subr.mxu0 0.0
    %319 = vmatpush1.xpose.msra.mxu0 0.0
    %320 = vmatprep.subr.mxu0 0.0
    %321 = vmatpush1.xpose.msra.mxu0 0.0
    %322 = vmatprep.subr.mxu0 0.0
    %323 = vmatpush1.xpose.msra.mxu0 0.0
    %324 = vmatprep.subr.mxu0 0.0
    %325 = vmatpush1.xpose.msra.mxu0 0.0
    %326 = vmatprep.subr.mxu0 0.0
    %327 = vmatpush1.xpose.msra.mxu0 0.0
    %328 = vmatprep.subr.mxu0 0.0
    %329 = vmatpush1.xpose.msra.mxu0 0.0
    %330 = vmatprep.subr.mxu0 0.0
    %331 = vmatpush1.xpose.msra.mxu0 0.0
    %332 = vmatprep.subr.mxu0 0.0
    %333 = vmatpush1.xpose.msra.mxu0 0.0
    %334 = vmatprep.subr.mxu0 0.0
    %335 = vmatpush1.xpose.msra.mxu0 0.0
    %336 = vmatprep.subr.mxu0 0.0
    %337 = vmatpush1.xpose.msra.mxu0 0.0
    %338 = vmatprep.subr.mxu0 0.0
    %339 = vmatpush1.xpose.msra.mxu0 0.0
    %340 = vmatprep.subr.mxu0 %v48
    %341 = vmatpush1.xpose.msra.mxu0 %v47
    %342 = vmatprep.subr.mxu0 0.0
    %343 = vmatpush2.xpose.msra.mxu0 0.0
    %344 = vmatprep.subr.mxu0 0.0
    %345 = vmatpush2.xpose.msra.mxu0 0.0
    %346 = vmatprep.subr.mxu0 0.0
    %347 = vmatpush2.xpose.msra.mxu0 0.0
    %348 = vmatprep.subr.mxu0 0.0
    %349 = vmatpush2.xpose.msra.mxu0 0.0
    %350 = vmatprep.subr.mxu0 0.0
    %351 = vmatpush2.xpose.msra.mxu0 0.0
    %352 = vmatprep.subr.mxu0 0.0
    %353 = vmatpush2.xpose.msra.mxu0 0.0
    %354 = vmatprep.subr.mxu0 0.0
    %355 = vmatpush2.xpose.msra.mxu0 0.0
    %356 = vmatprep.subr.mxu0 0.0
    %357 = vmatpush2.xpose.msra.mxu0 0.0
    %358 = vmatprep.subr.mxu0 0.0
    %359 = vmatpush2.xpose.msra.mxu0 0.0
    %360 = vmatprep.subr.mxu0 0.0
    %361 = vmatpush2.xpose.msra.mxu0 0.0
    %362 = vmatprep.subr.mxu0 0.0
    %363 = vmatpush2.xpose.msra.mxu0 0.0
    %364 = vmatprep.subr.mxu0 0.0
    %365 = vmatpush2.xpose.msra.mxu0 0.0
    %366 = vmatprep.subr.mxu0 0.0
    %367 = vmatpush2.xpose.msra.mxu0 0.0
    %368 = vmatprep.subr.mxu0 0.0
    %369 = vmatpush2.xpose.msra.mxu0 0.0
    %370 = vmatprep.subr.mxu0 0.0
    %371 = vmatpush2.xpose.msra.mxu0 0.0
    %372 = vmatprep.subr.mxu0 0.0
    %373 = vmatpush2.xpose.msra.mxu0 0.0
    %374 = vmatprep.mubr.f32.mxu0 %v91
    %375 = vmatmul.mubr.f32.gmra.mxu0 %v89
    %v376 = vpop.f32.mrf.mxu0
    %v377 = vadd.f32 %v307, %v376
    %v378 = vpop.f32.mrf.mxu0
    %379 = vdwg.mxu0
    %vm380 = vcmask 58368
    %381 = vst.msk [vmem:[#allocation7] sm:$0x3] %vm380, %v377
    // Predicated region
    $region22: #{tpu_custom_call.1} parent=1 // pred_check
      _
    $region23: #{tpu_custom_call.1} parent=1 // pred_check_branch
      %383 = sbr.rel (0) target = $region25
    $region24: #{tpu_custom_call.1} parent=1 // pred_region
      %s385 = ssub.s32 32, 32
      %386 = vsyncadd [#allocation4], %s385
      %s388 = sshll.u32 [#allocation7], 4
      %s389 = int_to_ptr.vmem [resolvable:$true] %s388
      %391 = dma.vmem_to_hbm [thread:$0]  %s389, 32, %s3, [#allocation4]
    $region25: #{tpu_custom_call.1} parent=1 // pred_fallthru
      _
    // Predicated region
    $region26: #{tpu_custom_call.1} parent=1 // pred_check
      _
    $region27: #{tpu_custom_call.1} parent=1 // pred_check_branch
      %393 = sbr.rel (0) target = $region29
    $region28: #{tpu_custom_call.1} parent=1 // pred_region
      %394 = dma.done [#allocation4], 32
    $region29: #{tpu_custom_call.1} parent=1 // pred_fallthru
      _
    %395 = vsyncpa [#allocation3], 1
    %396 = vsyncpa [#allocation6], 1
    %397 = vsyncpa [#allocation4], 1

</llo_original>
